<compile_context>
chip_gen: v5e
topology: v5e:2x2
jax: 0.10.0
libtpu: 0.0.40
codegen_flags: <defaults>
</compile_context>

<pallas_src>
import jax
import jax.numpy as jnp
from jax.experimental import pallas as pl
from jax.experimental.pallas import tpu as pltpu

_LANES = 128
_SUBLANES = 8
_PACK = 8  # batch rows folded onto the lane axis (8 * In=16 -> 128 lanes)


def _mlp_kernel(x_ref, w1_ref, b1_ref, w2_ref, b2_ref, o_ref):
    # fc1: (rows, In) @ (In, H) with f32 accumulation on the MXU.
    h = jnp.dot(x_ref[...], w1_ref[...], preferred_element_type=jnp.float32)
    # Bias add + ReLU in f32 on the VPU.
    h = jnp.maximum(h + b1_ref[...], 0.0)
    # fc2: cast activations to the weight dtype for the MXU.
    y = jnp.dot(h.astype(w2_ref.dtype), w2_ref[...],
                preferred_element_type=jnp.float32)
    o_ref[...] = (y + b2_ref[...]).astype(o_ref.dtype)


def _round_down(n, m):
    return max(m, (n // m) * m)


def _pick_block_rows(n_in, n_hidden, n_out, x_itemsize, out_itemsize,
                     tile_vmem_bytes):
    """Kernel-facing x rows per grid step such that the double-buffered x/out
    tiles plus the f32 h/y temporaries fit the VMEM tile budget."""
    lane_pad = lambda n: -(-n // _LANES) * _LANES
    bytes_per_row = (2 * lane_pad(n_in) * x_itemsize       # x tile (2 buffers)
                     + 2 * lane_pad(n_out) * out_itemsize  # out tile (2 buffers)
                     + lane_pad(n_hidden) * 4              # h temporary (f32)
                     + lane_pad(n_out) * 4)                # y temporary (f32)
    return _round_down(int(tile_vmem_bytes) // bytes_per_row, _SUBLANES)


def _run_mlp(x, w1, b1_2d, w2, b2_2d, out_dtype, block_rows, vmem_limit_bytes):
    rows, n_in = x.shape
    n_hidden = w1.shape[1]
    n_out = w2.shape[1]

    cost = pl.CostEstimate(
        flops=2 * rows * (n_in * n_hidden + n_hidden * n_out),
        transcendentals=0,
        bytes_accessed=(x.size * x.dtype.itemsize
                        + (w1.size + w2.size + b1_2d.size + b2_2d.size) * 4
                        + rows * n_out * jnp.dtype(out_dtype).itemsize),
    )

    if rows <= block_rows:
        # Everything fits in VMEM: single shot, no grid, zero per-step
        # pipeline overhead.
        return pl.pallas_call(
            _mlp_kernel,
            out_shape=jax.ShapeDtypeStruct((rows, n_out), out_dtype),
            in_specs=[pl.BlockSpec(memory_space=pltpu.MemorySpace.VMEM)] * 5,
            out_specs=pl.BlockSpec(memory_space=pltpu.MemorySpace.VMEM),
            compiler_params=pltpu.CompilerParams(
                vmem_limit_bytes=int(vmem_limit_bytes)),
            cost_estimate=cost,
        )(x, w1, b1_2d, w2, b2_2d)

    # Software-pipelined sweep over row tiles of x.  Weights/biases map to
    # block (0, 0) every step -> DMA'd once and VMEM-resident.  The grid is
    # cdiv(rows, block_rows); Pallas masks the ragged last block, so there is
    # no pad / slice HBM pass in the wrapper.
    return pl.pallas_call(
        _mlp_kernel,
        out_shape=jax.ShapeDtypeStruct((rows, n_out), out_dtype),
        grid=(pl.cdiv(rows, block_rows),),
        in_specs=[
            pl.BlockSpec((block_rows, n_in), lambda i: (i, 0)),
            pl.BlockSpec((n_in, n_hidden), lambda i: (0, 0)),
            pl.BlockSpec((1, n_hidden), lambda i: (0, 0)),
            pl.BlockSpec((n_hidden, n_out), lambda i: (0, 0)),
            pl.BlockSpec((1, n_out), lambda i: (0, 0)),
        ],
        out_specs=pl.BlockSpec((block_rows, n_out), lambda i: (i, 0)),
        compiler_params=pltpu.CompilerParams(
            # Row tiles are independent -> shard across TensorCores where
            # available (v7x); harmless elsewhere.
            dimension_semantics=("parallel",),
            vmem_limit_bytes=int(vmem_limit_bytes),
        ),
        cost_estimate=cost,
    )(x, w1, b1_2d, w2, b2_2d)


def patch_prediction_forward(x, w1, b1, w2, b2, *, block_rows=None,
                             tile_vmem_bytes=16 * 1024 * 1024):
    """PatchPredictionModel.forward: relu(x @ w1 + b1) @ w2 + b2.

    x: (B, In).  w1: (In, H), b1: (H,), w2: (H, Out), b2: (Out,) — nn.Linear
    weights stored transposed.  `block_rows` (kernel-facing rows per grid
    step) is auto-derived from `tile_vmem_bytes` when None.
    """
    B, n_in = x.shape
    n_hidden = w1.shape[1]
    n_out = w2.shape[1]
    out_dtype = x.dtype

    b1f = b1.astype(jnp.float32)
    b2f = b2.astype(jnp.float32)

    # Lane packing: fold _PACK batch rows onto the 128-lane axis.  The x/out
    # reshapes are free row-major views (no HBM pass, unlike a transpose);
    # the block-diagonal weights / tiled biases are a few-KiB one-time build.
    if B % _PACK == 0 and B > 0:
        xk = x.reshape(B // _PACK, _PACK * n_in)
        eye = jnp.eye(_PACK, dtype=w1.dtype)
        w1k = jnp.kron(eye, w1)                        # (PACK*In, PACK*H) block-diag
        w2k = jnp.kron(eye.astype(w2.dtype), w2)       # (PACK*H, PACK*Out) block-diag
        b1k = jnp.tile(b1f, _PACK).reshape(1, _PACK * n_hidden)
        b2k = jnp.tile(b2f, _PACK).reshape(1, _PACK * n_out)
    else:
        # Fallback (B not a multiple of 8): unpacked layout, still no padding.
        xk, w1k, w2k = x, w1, w2
        b1k = b1f.reshape(1, n_hidden)
        b2k = b2f.reshape(1, n_out)

    if block_rows is None:
        block_rows = _pick_block_rows(
            xk.shape[1], w1k.shape[1], w2k.shape[1],
            xk.dtype.itemsize, jnp.dtype(out_dtype).itemsize, tile_vmem_bytes)
    else:
        # Sublane alignment (f32): rows per block must be a multiple of 8.
        block_rows = _round_down(int(block_rows), _SUBLANES)

    weight_bytes = (w1k.size * w1k.dtype.itemsize
                    + w2k.size * w2k.dtype.itemsize
                    + (b1k.size + b2k.size) * 4)
    vmem_limit = int(tile_vmem_bytes) + 2 * int(weight_bytes) + (4 << 20)

    out_k = _run_mlp(xk, w1k, b1k, w2k, b2k, out_dtype, block_rows, vmem_limit)
    return out_k.reshape(B, n_out)


def init_params(key, input_size, hidden_size, output_size):
    """nn.Linear-style uniform(-1/sqrt(fan_in), 1/sqrt(fan_in)) init."""
    k1, k2, k3, k4 = jax.random.split(key, 4)
    bound1 = 1.0 / jnp.sqrt(input_size)
    bound2 = 1.0 / jnp.sqrt(hidden_size)
    # Stored as (in_features, out_features) == transpose of PyTorch's (out, in).
    w1 = jax.random.uniform(k1, (input_size, hidden_size), jnp.float32, -bound1, bound1)
    b1 = jax.random.uniform(k2, (hidden_size,), jnp.float32, -bound1, bound1)
    w2 = jax.random.uniform(k3, (hidden_size, output_size), jnp.float32, -bound2, bound2)
    b2 = jax.random.uniform(k4, (output_size,), jnp.float32, -bound2, bound2)
    return w1, b1, w2, b2


if __name__ == "__main__":
    # Shapes consistent with the module: input=16, hidden=32, output=8.
    input_size, hidden_size, output_size = 16, 32, 8
    key = jax.random.PRNGKey(0)
    kx, kp, kb, kc = jax.random.split(key, 4)
    w1, b1, w2, b2 = init_params(kp, input_size, hidden_size, output_size)

    def ref(xx):
        return jnp.maximum(xx @ w1 + b1, 0.0) @ w2 + b2

    # 1) Small batch (module-sized): lane-packed, single-shot no-grid path.
    batch = 8
    x = jax.random.normal(kx, (batch, input_size), jnp.float32)
    out = jax.block_until_ready(patch_prediction_forward(x, w1, b1, w2, b2))
    assert out.shape == (batch, output_size)
    assert jnp.allclose(out, ref(x), atol=1e-4, rtol=1e-4)

    # 2) Gridded path with a ragged last block (block_rows forced small so the
    #    test stays tiny; production auto-derives ~37K rows per step).
    big_b = 1088   # -> 136 packed rows; block_rows=64 -> grid of 3, last block ragged
    xb = jax.random.normal(kb, (big_b, input_size), jnp.float32)
    out_b = jax.block_until_ready(
        patch_prediction_forward(xb, w1, b1, w2, b2, block_rows=64))
    assert out_b.shape == (big_b, output_size)
    assert jnp.allclose(out_b, ref(xb), atol=1e-4, rtol=1e-4)

    # 3) Batch not a multiple of 8: unpacked fallback path.
    xs = jax.random.normal(kc, (13, input_size), jnp.float32)
    out_s = jax.block_until_ready(patch_prediction_forward(xs, w1, b1, w2, b2))
    assert out_s.shape == (13, output_size)
    assert jnp.allclose(out_s, ref(xs), atol=1e-4, rtol=1e-4)

    print("KERNEL_OK")
</pallas_src>

<mosaic_0001>
module attributes {stable_mosaic.version = 11 : i64} {
  func.func @_mlp_kernel(%arg0: memref<1x128xf32, #tpu.memory_space<vmem>>, %arg1: memref<128x256xf32, #tpu.memory_space<vmem>>, %arg2: memref<1x256xf32, #tpu.memory_space<vmem>>, %arg3: memref<256x64xf32, #tpu.memory_space<vmem>>, %arg4: memref<1x64xf32, #tpu.memory_space<vmem>>, %arg5: memref<1x64xf32, #tpu.memory_space<vmem>>) attributes {dimension_semantics = [], scalar_prefetch = 0 : i64, scratch_operands = 0 : i64, tpu.core_type = #tpu.core_type<tc>} {
    %c0 = arith.constant 0 : index
    %c0_0 = arith.constant 0 : index
    %0 = vector.load %arg0[%c0, %c0_0] : memref<1x128xf32, #tpu.memory_space<vmem>>, vector<1x128xf32>
    %c0_1 = arith.constant 0 : index
    %c0_2 = arith.constant 0 : index
    %1 = vector.load %arg1[%c0_1, %c0_2] : memref<128x256xf32, #tpu.memory_space<vmem>>, vector<128x256xf32>
    %cst = arith.constant dense<0.000000e+00> : vector<1x256xf32>
    %2 = tpu.matmul %0, %1, %cst {dimension_numbers = #tpu.dot_dimension_numbers<[1], [0], [0], [1], [0, 0, 1, 1], [], []>} : vector<1x128xf32>, vector<128x256xf32>, vector<1x256xf32> -> vector<1x256xf32>
    %c0_3 = arith.constant 0 : index
    %c0_4 = arith.constant 0 : index
    %3 = vector.load %arg2[%c0_3, %c0_4] : memref<1x256xf32, #tpu.memory_space<vmem>>, vector<1x256xf32>
    %4 = arith.addf %2, %3 : vector<1x256xf32>
    %cst_5 = arith.constant 0.000000e+00 : f32
    %5 = vector.broadcast %cst_5 : f32 to vector<1x256xf32>
    %6 = arith.maximumf %4, %5 : vector<1x256xf32>
    %c0_6 = arith.constant 0 : index
    %c0_7 = arith.constant 0 : index
    %7 = vector.load %arg3[%c0_6, %c0_7] : memref<256x64xf32, #tpu.memory_space<vmem>>, vector<256x64xf32>
    %cst_8 = arith.constant dense<0.000000e+00> : vector<1x64xf32>
    %8 = tpu.matmul %6, %7, %cst_8 {dimension_numbers = #tpu.dot_dimension_numbers<[1], [0], [0], [1], [0, 0, 1, 1], [], []>} : vector<1x256xf32>, vector<256x64xf32>, vector<1x64xf32> -> vector<1x64xf32>
    %c0_9 = arith.constant 0 : index
    %c0_10 = arith.constant 0 : index
    %9 = vector.load %arg4[%c0_9, %c0_10] : memref<1x64xf32, #tpu.memory_space<vmem>>, vector<1x64xf32>
    %10 = arith.addf %8, %9 : vector<1x64xf32>
    %c0_11 = arith.constant 0 : index
    %c0_12 = arith.constant 0 : index
    %11 = vector.load %arg5[%c0_11, %c0_12] : memref<1x64xf32, #tpu.memory_space<vmem>>, vector<1x64xf32>
    tpu.vector_store %arg5[%c0_11, %c0_12], %10 {strides = array<i32>} : memref<1x64xf32, #tpu.memory_space<vmem>>, vector<1x64xf32>,
    return
  }
}

</mosaic_0001>

<llo_original>
// kernel: tpu_custom_call.1
$region0: #{tpu_custom_call.1}
  #allocation0 [shape = 'u32[]', space=smem, size = 0x4, offset = 0x4, fixed_abs, tag = 'smem constant byte address 0x4 - core index']
  #allocation1 [shape = 'u32[72,128]{1,0:T(1,128)}', space=vmem, size = 0x9000, scoped, tag = 'internal scratch']
  %s0 = inlined_call_operand.vmem [shape: f32[1,128], index: 0, kind: input, shape index: {}]
  %s1 = inlined_call_operand.vmem [shape: f32[128,256], index: 1, kind: input, shape index: {}]
  %s2 = inlined_call_operand.vmem [shape: f32[1,256], index: 2, kind: input, shape index: {}]
  %s3 = inlined_call_operand.vmem [shape: f32[256,64], index: 3, kind: input, shape index: {}]
  %s4 = inlined_call_operand.vmem [shape: f32[1,64], index: 4, kind: input, shape index: {}]
  %s5 = inlined_call_operand.hbm [shape: f32[1,64], index: 5, kind: output, shape index: {}]
  %s6 = sld [smem:[#allocation0]]
  $region30: #{tpu_custom_call.1} parent=0
    _
  %s8 = ssub.s32 1, %s6
  %s9 = scalar_select 0, %s8, %s6
  $region1: #{tpu_custom_call.1} parent=0
    #allocation2 [shape = 'u8[512]{0}', space=vmem, size = 0x400, scoped, tag = 'output window, operand 0, single buffered']
    #allocation3 [shape = 's32[1]{0}', space=sflag, size = 0x4, scoped, tag = 'scoped memory for tpu_custom_call.1']
    %10 = vsyncpa [#allocation3], 0
    // Predicated region
    $region2: #{tpu_custom_call.1} parent=1 // pred_check
      _
    $region3: #{tpu_custom_call.1} parent=1 // pred_check_branch
      %12 = sbr.rel (0) target = $region5
    $region4: #{tpu_custom_call.1} parent=1 // pred_region
      _
    $region5: #{tpu_custom_call.1} parent=1 // pred_fallthru
      _
    // Predicated region
    $region6: #{tpu_custom_call.1} parent=1 // pred_check
      _
    $region7: #{tpu_custom_call.1} parent=1 // pred_check_branch
      %14 = sbr.rel (0) target = $region9
    $region8: #{tpu_custom_call.1} parent=1 // pred_region
      _
    $region9: #{tpu_custom_call.1} parent=1 // pred_fallthru
      _
    // Predicated region
    $region10: #{tpu_custom_call.1} parent=1 // pred_check
      _
    $region11: #{tpu_custom_call.1} parent=1 // pred_check_branch
      %16 = sbr.rel (0) target = $region13
    $region12: #{tpu_custom_call.1} parent=1 // pred_region
      _
    $region13: #{tpu_custom_call.1} parent=1 // pred_fallthru
      _
    // Predicated region
    $region14: #{tpu_custom_call.1} parent=1 // pred_check
      _
    $region15: #{tpu_custom_call.1} parent=1 // pred_check_branch
      %18 = sbr.rel (0) target = $region17
    $region16: #{tpu_custom_call.1} parent=1 // pred_region
      _
    $region17: #{tpu_custom_call.1} parent=1 // pred_fallthru
      _
    // Predicated region
    $region18: #{tpu_custom_call.1} parent=1 // pred_check
      _
    $region19: #{tpu_custom_call.1} parent=1 // pred_check_branch
      %20 = sbr.rel (0) target = $region21
    $region20: #{tpu_custom_call.1} parent=1 // pred_region
      _
    $region21: #{tpu_custom_call.1} parent=1 // pred_fallthru
      _
    %v21 = vld [vmem:[%s0] sm:$0x1]
    %v22 = vld [vmem:[%s1] sm:$0xff]
    %v23 = vld [vmem:[%s1 + $0x8] sm:$0xff]
    %v24 = vld [vmem:[%s1 + $0x10] sm:$0xff]
    %v25 = vld [vmem:[%s1 + $0x18] sm:$0xff]
    %v26 = vld [vmem:[%s1 + $0x20] sm:$0xff]
    %v27 = vld [vmem:[%s1 + $0x28] sm:$0xff]
    %v28 = vld [vmem:[%s1 + $0x30] sm:$0xff]
    %v29 = vld [vmem:[%s1 + $0x38] sm:$0xff]
    %v30 = vld [vmem:[%s1 + $0x40] sm:$0xff]
    %v31 = vld [vmem:[%s1 + $0x48] sm:$0xff]
    %v32 = vld [vmem:[%s1 + $0x50] sm:$0xff]
    %v33 = vld [vmem:[%s1 + $0x58] sm:$0xff]
    %v34 = vld [vmem:[%s1 + $0x60] sm:$0xff]
    %v35 = vld [vmem:[%s1 + $0x68] sm:$0xff]
    %v36 = vld [vmem:[%s1 + $0x70] sm:$0xff]
    %v37 = vld [vmem:[%s1 + $0x78] sm:$0xff]
    %v38 = vld [vmem:[%s1 + $0x80] sm:$0xff]
    %v39 = vld [vmem:[%s1 + $0x88] sm:$0xff]
    %v40 = vld [vmem:[%s1 + $0x90] sm:$0xff]
    %v41 = vld [vmem:[%s1 + $0x98] sm:$0xff]
    %v42 = vld [vmem:[%s1 + $0xa0] sm:$0xff]
    %v43 = vld [vmem:[%s1 + $0xa8] sm:$0xff]
    %v44 = vld [vmem:[%s1 + $0xb0] sm:$0xff]
    %v45 = vld [vmem:[%s1 + $0xb8] sm:$0xff]
    %v46 = vld [vmem:[%s1 + $0xc0] sm:$0xff]
    %v47 = vld [vmem:[%s1 + $0xc8] sm:$0xff]
    %v48 = vld [vmem:[%s1 + $0xd0] sm:$0xff]
    %v49 = vld [vmem:[%s1 + $0xd8] sm:$0xff]
    %v50 = vld [vmem:[%s1 + $0xe0] sm:$0xff]
    %v51 = vld [vmem:[%s1 + $0xe8] sm:$0xff]
    %v52 = vld [vmem:[%s1 + $0xf0] sm:$0xff]
    %v53 = vld [vmem:[%s1 + $0xf8] sm:$0xff]
    %v54 = vld [vmem:[%s2] sm:$0x3]
    %v56 = vperm.slane %v54, 0
    %v57 = vperm.slane %v54, 1
    %60 = vmatpush.msra.mxu0 %v52
    %61 = vmatpush.msra.mxu0 %v50
    %62 = vmatpush.msra.mxu0 %v48
    %63 = vmatpush.msra.mxu0 %v46
    %64 = vmatpush.msra.mxu0 %v44
    %65 = vmatpush.msra.mxu0 %v42
    %66 = vmatpush.msra.mxu0 %v40
    %67 = vmatpush.msra.mxu0 %v38
    %68 = vmatpush.msra.mxu0 %v36
    %69 = vmatpush.msra.mxu0 %v34
    %70 = vmatpush.msra.mxu0 %v32
    %71 = vmatpush.msra.mxu0 %v30
    %72 = vmatpush.msra.mxu0 %v28
    %73 = vmatpush.msra.mxu0 %v26
    %74 = vmatpush.msra.mxu0 %v24
    %75 = vmatpush.msra.mxu0 %v22
    %76 = vmatmul.f32.gmra.mxu0 %v21
    %v77 = vpop.f32.mrf.mxu0
    %v78 = vadd.f32 %v56, %v77
    %79 = vdwg.mxu0
    %80 = vmatpush.msra.mxu0 %v53
    %81 = vmatpush.msra.mxu0 %v51
    %82 = vmatpush.msra.mxu0 %v49
    %83 = vmatpush.msra.mxu0 %v47
    %84 = vmatpush.msra.mxu0 %v45
    %85 = vmatpush.msra.mxu0 %v43
    %86 = vmatpush.msra.mxu0 %v41
    %87 = vmatpush.msra.mxu0 %v39
    %88 = vmatpush.msra.mxu0 %v37
    %89 = vmatpush.msra.mxu0 %v35
    %90 = vmatpush.msra.mxu0 %v33
    %91 = vmatpush.msra.mxu0 %v31
    %92 = vmatpush.msra.mxu0 %v29
    %93 = vmatpush.msra.mxu0 %v27
    %94 = vmatpush.msra.mxu0 %v25
    %95 = vmatpush.msra.mxu0 %v23
    %96 = vmatmul.f32.gmra.mxu0 %v21
    %v97 = vpop.f32.mrf.mxu0
    %v98 = vadd.f32 %v57, %v97
    %99 = vdwg.mxu0
    %v100 = vmax.f32 %v78, 0.0
    %v101 = vmax.f32 %v98, 0.0
    %v102 = vld [vmem:[%s3] sm:$0xff]
    %v103 = vld [vmem:[%s3 + $0x8] sm:$0xff]
    %v104 = vld [vmem:[%s3 + $0x10] sm:$0xff]
    %v105 = vld [vmem:[%s3 + $0x18] sm:$0xff]
    %v106 = vld [vmem:[%s3 + $0x20] sm:$0xff]
    %v107 = vld [vmem:[%s3 + $0x28] sm:$0xff]
    %v108 = vld [vmem:[%s3 + $0x30] sm:$0xff]
    %v109 = vld [vmem:[%s3 + $0x38] sm:$0xff]
    %v110 = vld [vmem:[%s3 + $0x40] sm:$0xff]
    %v111 = vld [vmem:[%s3 + $0x48] sm:$0xff]
    %v112 = vld [vmem:[%s3 + $0x50] sm:$0xff]
    %v113 = vld [vmem:[%s3 + $0x58] sm:$0xff]
    %v114 = vld [vmem:[%s3 + $0x60] sm:$0xff]
    %v115 = vld [vmem:[%s3 + $0x68] sm:$0xff]
    %v116 = vld [vmem:[%s3 + $0x70] sm:$0xff]
    %v117 = vld [vmem:[%s3 + $0x78] sm:$0xff]
    %v118 = vld [vmem:[%s3 + $0x80] sm:$0xff]
    %v119 = vld [vmem:[%s3 + $0x88] sm:$0xff]
    %v120 = vld [vmem:[%s3 + $0x90] sm:$0xff]
    %v121 = vld [vmem:[%s3 + $0x98] sm:$0xff]
    %v122 = vld [vmem:[%s3 + $0xa0] sm:$0xff]
    %v123 = vld [vmem:[%s3 + $0xa8] sm:$0xff]
    %v124 = vld [vmem:[%s3 + $0xb0] sm:$0xff]
    %v125 = vld [vmem:[%s3 + $0xb8] sm:$0xff]
    %v126 = vld [vmem:[%s3 + $0xc0] sm:$0xff]
    %v127 = vld [vmem:[%s3 + $0xc8] sm:$0xff]
    %v128 = vld [vmem:[%s3 + $0xd0] sm:$0xff]
    %v129 = vld [vmem:[%s3 + $0xd8] sm:$0xff]
    %v130 = vld [vmem:[%s3 + $0xe0] sm:$0xff]
    %v131 = vld [vmem:[%s3 + $0xe8] sm:$0xff]
    %v132 = vld [vmem:[%s3 + $0xf0] sm:$0xff]
    %v133 = vld [vmem:[%s3 + $0xf8] sm:$0xff]
    %v134 = vld [vmem:[%s4] sm:$0x1]
    %135 = vmatpush.msra.mxu0 %v117
    %136 = vmatpush.msra.mxu0 %v116
    %137 = vmatpush.msra.mxu0 %v115
    %138 = vmatpush.msra.mxu0 %v114
    %139 = vmatpush.msra.mxu0 %v113
    %140 = vmatpush.msra.mxu0 %v112
    %141 = vmatpush.msra.mxu0 %v111
    %142 = vmatpush.msra.mxu0 %v110
    %143 = vmatpush.msra.mxu0 %v109
    %144 = vmatpush.msra.mxu0 %v108
    %145 = vmatpush.msra.mxu0 %v107
    %146 = vmatpush.msra.mxu0 %v106
    %147 = vmatpush.msra.mxu0 %v105
    %148 = vmatpush.msra.mxu0 %v104
    %149 = vmatpush.msra.mxu0 %v103
    %150 = vmatpush.msra.mxu0 %v102
    %151 = vmatmul.f32.gmra.mxu0 %v100
    %v152 = vpop.f32.mrf.mxu0
    %v153 = vadd.f32 %v134, %v152
    %154 = vdwg.mxu0
    %155 = vmatpush.msra.mxu0 %v133
    %156 = vmatpush.msra.mxu0 %v132
    %157 = vmatpush.msra.mxu0 %v131
    %158 = vmatpush.msra.mxu0 %v130
    %159 = vmatpush.msra.mxu0 %v129
    %160 = vmatpush.msra.mxu0 %v128
    %161 = vmatpush.msra.mxu0 %v127
    %162 = vmatpush.msra.mxu0 %v126
    %163 = vmatpush.msra.mxu0 %v125
    %164 = vmatpush.msra.mxu0 %v124
    %165 = vmatpush.msra.mxu0 %v123
    %166 = vmatpush.msra.mxu0 %v122
    %167 = vmatpush.msra.mxu0 %v121
    %168 = vmatpush.msra.mxu0 %v120
    %169 = vmatpush.msra.mxu0 %v119
    %170 = vmatpush.msra.mxu0 %v118
    %171 = vmatmul.f32.gmra.mxu0 %v101
    %v172 = vpop.f32.mrf.mxu0
    %v173 = vadd.f32 %v153, %v172
    %174 = vdwg.mxu0
    %vm175 = vcmask 516096
    %176 = vst.msk [vmem:[#allocation2] sm:$0x1] %vm175, %v173
    // Predicated region
    $region22: #{tpu_custom_call.1} parent=1 // pred_check
      _
    $region23: #{tpu_custom_call.1} parent=1 // pred_check_branch
      %178 = sbr.rel (0) target = $region25
    $region24: #{tpu_custom_call.1} parent=1 // pred_region
      %180 = vsyncadd [#allocation3], 0
      %s182 = sshll.u32 [#allocation2], 4
      %s183 = int_to_ptr.vmem [resolvable:$true] %s182
      %s184 = sshll.u32 %s5, 4
      %s185 = int_to_ptr.hbm [resolvable:$true] %s184
      %187 = dma.vmem_to_hbm [thread:$0]  %s183, 16, %s185, [#allocation3]
    $region25: #{tpu_custom_call.1} parent=1 // pred_fallthru
      _
    // Predicated region
    $region26: #{tpu_custom_call.1} parent=1 // pred_check
      _
    $region27: #{tpu_custom_call.1} parent=1 // pred_check_branch
      %189 = sbr.rel (0) target = $region29
    $region28: #{tpu_custom_call.1} parent=1 // pred_region
      %191 = dma.done [#allocation3], 16
    $region29: #{tpu_custom_call.1} parent=1 // pred_fallthru
      _
    %192 = vsyncpa [#allocation3], 1

</llo_original>
